<compile_context>
chip_gen: v6e
topology: v6e:2x2x1
jax: 0.10.0
libtpu: 0.0.40
codegen_flags: <defaults>
</compile_context>

<pallas_src>
import functools

import jax
import jax.numpy as jnp
from jax import lax
from jax.experimental import pallas as pl
from jax.experimental.pallas import tpu as pltpu


_LANE = 128
_SUBLANE_BF16 = 16
_VMEM_BUDGET = 24 * 1024 * 1024   # per-step working-set target (<< 32 MiB scoped default)


def _round_up(x, m):
    return ((x + m - 1) // m) * m


def _pad_axis(arr, multiple, axis):
    size = arr.shape[axis]
    pad = (-size) % multiple
    if pad == 0:
        return arr
    widths = [(0, 0)] * arr.ndim
    widths[axis] = (0, pad)
    return jnp.pad(arr, widths)


def _pick_tile(dim, preferred, align):
    """Largest tile <= preferred that divides `dim` and is a multiple of `align`;
    falls back to the full extent (always a legal Pallas block)."""
    t = min(preferred, dim)
    t = (t // align) * align
    while t >= align:
        if dim % t == 0:
            return t
        t -= align
    return dim


# ---------------------------------------------------------------------------
# Fused GCN layer kernel:  O = A_hat @ (relu?(X) @ W) + b
#   grid = (Np // tm, Np // tk); axis 0 "parallel" (output rows), axis 1
#   "arbitrary" (reduction over A_hat columns). W and bias use constant block
#   indices (DMA'd once); the f32 output block stays resident across k and
#   doubles as the accumulator.
# ---------------------------------------------------------------------------

def _gcn_layer_kernel(x_ref, w_ref, a_ref, b_ref, o_ref, *, apply_relu):
    k = pl.program_id(1)

    @pl.when(k == 0)
    def _():
        o_ref[...] = jnp.zeros_like(o_ref)

    x = x_ref[...]
    if apply_relu:                                  # previous layer's ReLU, fused in
        x = jnp.maximum(x, 0.0)
    y = jnp.dot(x.astype(jnp.bfloat16), w_ref[...],
                preferred_element_type=jnp.float32)               # (tk, Hp)
    o_ref[...] += jnp.dot(a_ref[...], y.astype(jnp.bfloat16),
                          preferred_element_type=jnp.float32)     # (tm, Hp)

    @pl.when(k == pl.num_programs(1) - 1)
    def _():
        o_ref[...] += b_ref[...]                    # f32 bias, fused epilogue


def _vmem_bytes(tm, tk, cin, hp):
    # conservative: double-buffered inputs + resident f32 output (x 2)
    a = tm * tk * 2 * 2
    x = tk * cin * 4 * 2
    w = cin * hp * 2 * 2
    o = tm * hp * 4 * 2
    b = hp * 4 * 2
    return a + x + w + o + b


def gcn_conv(x_in, w, bias, a_hat, *, apply_relu, tm=512, tk=1024):
    """One GCN layer on padded shapes:  A_hat @ (relu?(x_in) @ w) + bias."""
    np_, cin = x_in.shape
    cin2, hp = w.shape
    assert cin == cin2 and a_hat.shape == (np_, np_) and bias.shape == (1, hp)

    # >=2 tiles on the parallel M axis whenever possible (v7x second TensorCore).
    tm = _pick_tile(np_, min(tm, max(_SUBLANE_BF16, np_ // 2)), _SUBLANE_BF16)
    tk = _pick_tile(np_, tk, _LANE)
    while _vmem_bytes(tm, tk, cin, hp) > _VMEM_BUDGET and tk > _LANE:
        tk = _pick_tile(np_, tk // 2, _LANE)
    while _vmem_bytes(tm, tk, cin, hp) > _VMEM_BUDGET and tm > _SUBLANE_BF16:
        tm = _pick_tile(np_, tm // 2, _SUBLANE_BF16)
    grid = (np_ // tm, np_ // tk)

    kernel = functools.partial(_gcn_layer_kernel, apply_relu=apply_relu)
    return pl.pallas_call(
        kernel,
        out_shape=jax.ShapeDtypeStruct((np_, hp), jnp.float32),
        grid_spec=pltpu.PrefetchScalarGridSpec(
            num_scalar_prefetch=0,
            grid=grid,
            in_specs=[
                pl.BlockSpec((tk, cin), lambda i, k: (k, 0)),   # X rows (prev acts)
                pl.BlockSpec((cin, hp), lambda i, k: (0, 0)),   # W, resident
                pl.BlockSpec((tm, tk), lambda i, k: (i, k)),    # A_hat tile (bf16)
                pl.BlockSpec((1, hp), lambda i, k: (0, 0)),     # bias, resident
            ],
            out_specs=pl.BlockSpec((tm, hp), lambda i, k: (i, 0)),
        ),
        compiler_params=pltpu.CompilerParams(
            dimension_semantics=("parallel", "arbitrary")),
    )(x_in, w, a_hat, bias)


# ---------------------------------------------------------------------------
# AutoLink_l2 (forward pass only)
# ---------------------------------------------------------------------------

class AutoLinkL2:
    """JAX/Pallas port of AutoLink_l2 (GCN conv stack; eval-mode dropout)."""

    def __init__(self, in_channels, hidden_channels, num_layers, dropout,
                 gnn_type, key):
        if gnn_type != 'GCN':
            # TODO(synk): SAGEConv aggregation path (mean-neighbor + root weight).
            raise SystemExit('The gnn type should be GCN (SAGE path not ported)')
        self.gnn_type = gnn_type
        self.num_conv_layers = num_layers
        self.hidden_channels = hidden_channels
        self.dropout = dropout

        hp = _round_up(hidden_channels, _LANE)
        self._hidden_pad = hp

        keys = jax.random.split(key, 2 * num_layers)
        self.weights, self.biases = [], []           # unpadded f32 (reference)
        self.weights_pad, self.biases_pad = [], []   # lane-padded kernel params
        fan_in = in_channels
        for i in range(num_layers):
            scale = 1.0 / jnp.sqrt(jnp.float32(fan_in))
            w = jax.random.uniform(keys[2 * i], (fan_in, hidden_channels),
                                   jnp.float32, -scale, scale)
            b = jax.random.uniform(keys[2 * i + 1], (hidden_channels,),
                                   jnp.float32, -scale, scale)
            self.weights.append(w)
            self.biases.append(b)
            # zero-pad in/out channels to multiples of 128 lanes; weights in bf16
            w_pad = _pad_axis(_pad_axis(w, _LANE, 1), _LANE, 0).astype(jnp.bfloat16)
            b_pad = _pad_axis(b, _LANE, 0).reshape(1, hp).astype(jnp.float32)
            self.weights_pad.append(w_pad)
            self.biases_pad.append(b_pad)
            fan_in = hidden_channels

        self._a_hat_cache = None   # bf16, node-padded (GCNConv(cached=True))

    @staticmethod
    def normalize_adj(adj):
        """GCN symmetric normalization with self-loops: D^-1/2 (A+I) D^-1/2,
        without materializing an n x n identity."""
        n = adj.shape[0]
        deg = jnp.sum(adj, axis=1) + 1.0
        dinv = jnp.where(deg > 0.0, lax.rsqrt(deg), 0.0)
        a_hat = adj * dinv[:, None] * dinv[None, :]
        idx = jnp.arange(n)
        return a_hat.at[idx, idx].add(dinv * dinv)

    def forward(self, x, adj_t):
        n = x.shape[0]

        # Normalize once per graph, pad nodes to a multiple of 128, cast to bf16 once.
        if self._a_hat_cache is None:
            a_hat = self.normalize_adj(adj_t)
            a_hat = _pad_axis(_pad_axis(a_hat, _LANE, 1), _LANE, 0)
            self._a_hat_cache = a_hat.astype(jnp.bfloat16)
        a_hat = self._a_hat_cache

        # Layer-0 input: lane/node padded, cast to bf16 once (no ReLU on layer 0).
        x0 = _pad_axis(_pad_axis(x, _LANE, 1), _LANE, 0).astype(jnp.bfloat16)

        hs = []
        h_prev = x0
        for i in range(self.num_conv_layers):
            # Previous layer's ReLU + X@W + A_hat aggregation fused in one kernel.
            h = gcn_conv(h_prev, self.weights_pad[i], self.biases_pad[i], a_hat,
                         apply_relu=(i > 0))
            hs.append(h)
            # F.dropout(training=False) is the identity.
            # TODO(synk): training-mode dropout (pltpu.prng_*) not implemented.
            h_prev = h

        # Final stack moves only ~4*n*L*hidden bytes — negligible vs the n^2
        # A_hat stream per layer — so it is left to XLA.
        x_hidden = jnp.stack(hs, axis=1)
        return x_hidden[:n, :, :self.hidden_channels]


def reference_forward(model, x, adj_t):
    """Pure-jnp f32 reference of the same forward pass."""
    a_hat = model.normalize_adj(adj_t)
    hs, h = [], x
    for i in range(model.num_conv_layers):
        out = a_hat @ (h @ model.weights[i]) + model.biases[i][None, :]
        hs.append(out)
        h = jnp.maximum(out, 0.0)
    return jnp.stack(hs, axis=1)


if __name__ == "__main__":
    key = jax.random.PRNGKey(0)
    kx, kadj, kparam = jax.random.split(key, 3)

    # Small shapes consistent with forward(x, adj_t): x (nodes, in_channels),
    # adj_t dense (nodes, nodes).
    num_nodes, in_channels, hidden = 64, 16, 32
    num_layers, dropout = 3, 0.0

    x = jax.random.normal(kx, (num_nodes, in_channels), jnp.float32)
    a = (jax.random.uniform(kadj, (num_nodes, num_nodes)) < 0.1).astype(jnp.float32)
    adj_t = jnp.maximum(a, a.T) * (1.0 - jnp.eye(num_nodes, dtype=jnp.float32))

    model = AutoLinkL2(in_channels, hidden, num_layers, dropout, 'GCN', kparam)

    out = jax.block_until_ready(model.forward(x, adj_t))
    ref = reference_forward(model, x, adj_t)

    assert out.shape == (num_nodes, num_layers, hidden), out.shape
    # bf16 MXU operands (f32 accumulation) => loosened tolerance vs f32 reference.
    assert jnp.allclose(out, ref, atol=3e-2, rtol=3e-2), \
        float(jnp.max(jnp.abs(out - ref)))

    print("KERNEL_OK")
</pallas_src>

<mosaic_0001>
module attributes {stable_mosaic.version = 11 : i64} {
  func.func @_gcn_layer_kernel(%arg0: i32, %arg1: i32, %arg2: memref<128x128xbf16, #tpu.memory_space<vmem>>, %arg3: memref<128x128xbf16, #tpu.memory_space<vmem>>, %arg4: memref<64x128xbf16, #tpu.memory_space<vmem>>, %arg5: memref<1x128xf32, #tpu.memory_space<vmem>>, %arg6: memref<64x128xf32, #tpu.memory_space<vmem>>) attributes {dimension_semantics = [#tpu.dimension_semantics<parallel>, #tpu.dimension_semantics<arbitrary>], iteration_bounds = array<i64: 2, 1>, scalar_prefetch = 0 : i64, scratch_operands = 0 : i64, tpu.core_type = #tpu.core_type<tc>, window_params = [{transform_indices = @transform_0, window_bounds = array<i64: 128, 128>}, {pipeline_mode = #tpu.pipeline_mode<synchronous>, transform_indices = @transform_1, window_bounds = array<i64: 128, 128>}, {transform_indices = @transform_2, window_bounds = array<i64: 64, 128>}, {pipeline_mode = #tpu.pipeline_mode<synchronous>, transform_indices = @transform_3, window_bounds = array<i64: 1, 128>}, {transform_indices = @transform_4, window_bounds = array<i64: 64, 128>}]} {
    %c0_i32 = arith.constant 0 : i32
    %0 = arith.cmpi eq, %arg1, %c0_i32 : i32
    %1 = arith.extui %0 : i1 to i32
    %c0_i32_0 = arith.constant 0 : i32
    %2 = arith.cmpi ne, %1, %c0_i32_0 : i32
    scf.if %2 {
      %cst_13 = arith.constant 0.000000e+00 : f32
      %15 = vector.broadcast %cst_13 : f32 to vector<64x128xf32>
      %c0_14 = arith.constant 0 : index
      %c0_15 = arith.constant 0 : index
      %16 = vector.load %arg6[%c0_14, %c0_15] : memref<64x128xf32, #tpu.memory_space<vmem>>, vector<64x128xf32>
      tpu.vector_store %arg6[%c0_14, %c0_15], %15 {strides = array<i32>} : memref<64x128xf32, #tpu.memory_space<vmem>>, vector<64x128xf32>,
    } else {
    }
    %c0 = arith.constant 0 : index
    %c0_1 = arith.constant 0 : index
    %3 = vector.load %arg2[%c0, %c0_1] : memref<128x128xbf16, #tpu.memory_space<vmem>>, vector<128x128xbf16>
    %c0_2 = arith.constant 0 : index
    %c0_3 = arith.constant 0 : index
    %4 = vector.load %arg3[%c0_2, %c0_3] : memref<128x128xbf16, #tpu.memory_space<vmem>>, vector<128x128xbf16>
    %cst = arith.constant dense<0.000000e+00> : vector<128x128xf32>
    %5 = tpu.matmul %3, %4, %cst {dimension_numbers = #tpu.dot_dimension_numbers<[1], [0], [0], [1], [0, 0, 1, 1], [], []>} : vector<128x128xbf16>, vector<128x128xbf16>, vector<128x128xf32> -> vector<128x128xf32>
    %c0_4 = arith.constant 0 : index
    %c0_5 = arith.constant 0 : index
    %6 = vector.load %arg6[%c0_4, %c0_5] : memref<64x128xf32, #tpu.memory_space<vmem>>, vector<64x128xf32>
    %c0_6 = arith.constant 0 : index
    %c0_7 = arith.constant 0 : index
    %7 = vector.load %arg4[%c0_6, %c0_7] : memref<64x128xbf16, #tpu.memory_space<vmem>>, vector<64x128xbf16>
    %8 = arith.truncf %5 : vector<128x128xf32> to vector<128x128xbf16>
    %cst_8 = arith.constant dense<0.000000e+00> : vector<64x128xf32>
    %9 = tpu.matmul %7, %8, %cst_8 {dimension_numbers = #tpu.dot_dimension_numbers<[1], [0], [0], [1], [0, 0, 1, 1], [], []>} : vector<64x128xbf16>, vector<128x128xbf16>, vector<64x128xf32> -> vector<64x128xf32>
    %10 = arith.addf %6, %9 : vector<64x128xf32>
    %c0_9 = arith.constant 0 : index
    %c0_10 = arith.constant 0 : index
    %11 = vector.load %arg6[%c0_9, %c0_10] : memref<64x128xf32, #tpu.memory_space<vmem>>, vector<64x128xf32>
    tpu.vector_store %arg6[%c0_9, %c0_10], %10 {strides = array<i32>} : memref<64x128xf32, #tpu.memory_space<vmem>>, vector<64x128xf32>,
    %c0_i32_11 = arith.constant 0 : i32
    %12 = arith.cmpi eq, %arg1, %c0_i32_11 : i32
    %13 = arith.extui %12 : i1 to i32
    %c0_i32_12 = arith.constant 0 : i32
    %14 = arith.cmpi ne, %13, %c0_i32_12 : i32
    scf.if %14 {
      %c0_13 = arith.constant 0 : index
      %c0_14 = arith.constant 0 : index
      %15 = vector.load %arg6[%c0_13, %c0_14] : memref<64x128xf32, #tpu.memory_space<vmem>>, vector<64x128xf32>
      %c0_15 = arith.constant 0 : index
      %c0_16 = arith.constant 0 : index
      %16 = vector.load %arg5[%c0_15, %c0_16] : memref<1x128xf32, #tpu.memory_space<vmem>>, vector<1x128xf32>
      %17 = vector.broadcast %16 : vector<1x128xf32> to vector<64x128xf32>
      %18 = arith.addf %15, %17 : vector<64x128xf32>
      %c0_17 = arith.constant 0 : index
      %c0_18 = arith.constant 0 : index
      %19 = vector.load %arg6[%c0_17, %c0_18] : memref<64x128xf32, #tpu.memory_space<vmem>>, vector<64x128xf32>
      tpu.vector_store %arg6[%c0_17, %c0_18], %18 {strides = array<i32>} : memref<64x128xf32, #tpu.memory_space<vmem>>, vector<64x128xf32>,
    } else {
    }
    return
  }
  func.func @transform_0(%arg0: i32, %arg1: i32) -> (i32, i32) {
    %c0_i32 = arith.constant 0 : i32
    %c0_i32_0 = arith.constant 0 : i32
    return %arg1, %c0_i32 : i32, i32
  }
  func.func @transform_1(%arg0: i32, %arg1: i32) -> (i32, i32) {
    %c0_i32 = arith.constant 0 : i32
    %c0_i32_0 = arith.constant 0 : i32
    %c0_i32_1 = arith.constant 0 : i32
    return %c0_i32, %c0_i32_0 : i32, i32
  }
  func.func @transform_2(%arg0: i32, %arg1: i32) -> (i32, i32) {
    %c0_i32 = arith.constant 0 : i32
    return %arg0, %arg1 : i32, i32
  }
  func.func @transform_3(%arg0: i32, %arg1: i32) -> (i32, i32) {
    %c0_i32 = arith.constant 0 : i32
    %c0_i32_0 = arith.constant 0 : i32
    %c0_i32_1 = arith.constant 0 : i32
    return %c0_i32, %c0_i32_0 : i32, i32
  }
  func.func @transform_4(%arg0: i32, %arg1: i32) -> (i32, i32) {
    %c0_i32 = arith.constant 0 : i32
    %c0_i32_0 = arith.constant 0 : i32
    return %arg0, %c0_i32 : i32, i32
  }
}

</mosaic_0001>

<llo_original>
// kernel: tpu_custom_call.1
$region0: #{tpu_custom_call.1}
  #allocation0 [shape = 'u32[]', space=smem, size = 0x4, offset = 0x4, fixed_abs, tag = 'smem constant byte address 0x4 - core index']
  #allocation1 [shape = 'u32[144,128]{1,0:T(1,128)}', space=vmem, size = 0x12000, scoped, tag = 'internal scratch']
  %s0 = inlined_call_operand.hbm [shape: bf16[128,128], index: 0, kind: input, shape index: {}]
  %s1 = inlined_call_operand.hbm [shape: bf16[128,128], index: 1, kind: input, shape index: {}]
  %s2 = inlined_call_operand.hbm [shape: bf16[128,128], index: 2, kind: input, shape index: {}]
  %s3 = inlined_call_operand.vmem [shape: f32[1,128], index: 3, kind: input, shape index: {}]
  %s4 = inlined_call_operand.hbm [shape: f32[128,128], index: 4, kind: output, shape index: {}]
  %s5 = sld [smem:[#allocation0]]
  $region69: #{tpu_custom_call.1} parent=0
    _
  %s7 = ssub.s32 1, %s5
  %s8 = scalar_select 0, %s7, %s5
  $region1: #{tpu_custom_call.1} parent=0
    #allocation2 [shape = 'u8[32768]{0}', space=vmem, size = 0x8000, scoped, tag = 'input window, operand 0, single buffered']
    #allocation3 [shape = 's32[2]{0}', space=sflag, size = 0x8, scoped, tag = 'scoped memory for tpu_custom_call.1']
    #allocation4 [shape = 's32[2]{0}', space=sflag, size = 0x8, scoped, tag = 'scoped memory for tpu_custom_call.1']
    #allocation5 [shape = 'u8[32768]{0}', space=vmem, size = 0x8000, scoped, tag = 'input window, operand 1, single buffered']
    #allocation6 [shape = 's32[1]{0}', space=sflag, size = 0x4, scoped, tag = 'scoped memory for tpu_custom_call.1']
    #allocation7 [shape = 'u8[32768]{0}', space=vmem, size = 0x8000, scoped, tag = 'input window, operand 2']
    #allocation8 [shape = 'u8[65536]{0}', space=vmem, size = 0x10000, scoped, tag = 'output window, operand 0']
    %9 = vsyncpa [#allocation3], 0
    %10 = vsyncpa [#allocation6], 0
    %11 = vsyncpa [#allocation4], 0
    %s12 = scalar_lea.sflag [#allocation4], 1
    %13 = vsyncpa %s12, 0
    loop: start=0, step=1, limit=4
    $region2: #{tpu_custom_call.1} parent=1 // loop_pre_header
      _
    $region3: #{tpu_custom_call.1} parent=1 // loop_header
      %s15 = sphi 0, %s19
      %p16 = scmp.ge.s32.totalorder %s15, 4
      %s22 = sphi 0, %s34
      %s23 = sphi 0, %s30
      %s24 = sphi 0, %s22
      %s25 = sphi 0, %s23
      %s26 = sphi 0, %s24
      %s27 = sphi 0, %s25
      %s37 = sphi 0, %s39
      %s40 = sphi 0, %s37
      %s41 = sphi 0, %s40
      %s57 = sphi 0, %s41
      %s61 = sphi 0, %s61
      %s63 = sphi 0, %s61
      %s64 = sphi 0, %s63
      %s78 = sphi 0, %s64
      %s86 = sphi 0, %s88
      %s89 = sphi 0, %s86
      %s90 = sphi 0, %s89
      %s106 = sphi 0, %s90
      %s110 = sphi 0, %s110
      %s112 = sphi 0, %s110
      %s113 = sphi 0, %s112
      %s127 = sphi 0, %s113
      %s133 = sphi 0, %s135
      %s136 = sphi 0, %s133
      %s137 = sphi 0, %s136
      %s153 = sphi 0, %s137
    $region4: #{tpu_custom_call.1} parent=1 // loop_header_branch
      %18 = sbr.rel (%p16) target = $region8
    $region5: #{tpu_custom_call.1} parent=1 // loop_body
      %s20 = ssub.s32 %s15, 1
      %s21 = ssub.s32 %s15, 2
      %s28 = sadd.s32 1, %s23
      %p29 = scmp.ge.s32.totalorder %s28, 1
      %s30 = scalar_select %p29, 0, %s28
      %s31 = sadd.s32 1, %s22
      %s32 = scalar_select %p29, %s31, %s22
      %p33 = scmp.ge.s32.totalorder %s32, 2
      %s34 = scalar_select %p33, 0, %s32
      %s35 = ssub.s32 %s23, %s30
      %p36 = scmp.eq.s32.totalorder %s35, 0
      %s38 = sadd.s32 %s37, 1
      %s39 = scalar_select %p36, %s37, %s38
      %p42 = pneg %p36
      %p43 = scmp.eq.s32.totalorder %s15, 1
      %p44 = por %p42, %p43
      %p45 = scmp.ne.s32.totalorder %s37, %s40
      %p46 = scmp.eq.s32.totalorder %s15, 0
      %p47 = por %p45, %p46
      %p48 = scmp.ne.s32.totalorder %s37, %s40
      %p49 = scmp.eq.s32.totalorder %s20, 1
      %p50 = por %p48, %p49
      %p51 = scmp.ne.s32.totalorder %s40, %s41
      %p52 = scmp.eq.s32.totalorder %s20, 0
      %p53 = por %p51, %p52
      %p54 = scmp.ne.s32.totalorder %s40, %s41
      %p55 = scmp.eq.s32.totalorder %s21, 1
      %p56 = por %p54, %p55
      %p58 = scmp.ne.s32.totalorder %s41, %s57
      %p59 = scmp.eq.s32.totalorder %s21, 0
      %p60 = por %p58, %p59
      %s62 = sadd.s32 %s61, 1
      %p65 = scmp.eq.s32.totalorder %s15, 1
      %p66 = scmp.ne.s32.totalorder %s61, %s63
      %p67 = scmp.eq.s32.totalorder %s15, 0
      %p68 = por %p66, %p67
      %p69 = scmp.ne.s32.totalorder %s61, %s63
      %p70 = scmp.eq.s32.totalorder %s20, 1
      %p71 = por %p69, %p70
      %p72 = scmp.ne.s32.totalorder %s63, %s64
      %p73 = scmp.eq.s32.totalorder %s20, 0
      %p74 = por %p72, %p73
      %p75 = scmp.ne.s32.totalorder %s63, %s64
      %p76 = scmp.eq.s32.totalorder %s21, 1
      %p77 = por %p75, %p76
      %p79 = scmp.ne.s32.totalorder %s64, %s78
      %p80 = scmp.eq.s32.totalorder %s21, 0
      %p81 = por %p79, %p80
      %s82 = ssub.s32 %s22, %s34
      %s83 = ssub.s32 %s23, %s30
      %s84 = sor.u32 %s82, %s83
      %p85 = scmp.eq.s32.totalorder %s84, 0
      %s87 = sadd.s32 %s86, 1
      %s88 = scalar_select %p85, %s86, %s87
      %p91 = pneg %p85
      %p92 = scmp.eq.s32.totalorder %s15, 1
      %p93 = por %p91, %p92
      %p94 = scmp.ne.s32.totalorder %s86, %s89
      %p95 = scmp.eq.s32.totalorder %s15, 0
      %p96 = por %p94, %p95
      %p97 = scmp.ne.s32.totalorder %s86, %s89
      %p98 = scmp.eq.s32.totalorder %s20, 1
      %p99 = por %p97, %p98
      %p100 = scmp.ne.s32.totalorder %s89, %s90
      %p101 = scmp.eq.s32.totalorder %s20, 0
      %p102 = por %p100, %p101
      %p103 = scmp.ne.s32.totalorder %s89, %s90
      %p104 = scmp.eq.s32.totalorder %s21, 1
      %p105 = por %p103, %p104
      %p107 = scmp.ne.s32.totalorder %s90, %s106
      %p108 = scmp.eq.s32.totalorder %s21, 0
      %p109 = por %p107, %p108
      %s111 = sadd.s32 %s110, 1
      %p114 = scmp.eq.s32.totalorder %s15, 1
      %p115 = scmp.ne.s32.totalorder %s110, %s112
      %p116 = scmp.eq.s32.totalorder %s15, 0
      %p117 = por %p115, %p116
      %p118 = scmp.ne.s32.totalorder %s110, %s112
      %p119 = scmp.eq.s32.totalorder %s20, 1
      %p120 = por %p118, %p119
      %p121 = scmp.ne.s32.totalorder %s112, %s113
      %p122 = scmp.eq.s32.totalorder %s20, 0
      %p123 = por %p121, %p122
      %p124 = scmp.ne.s32.totalorder %s112, %s113
      %p125 = scmp.eq.s32.totalorder %s21, 1
      %p126 = por %p124, %p125
      %p128 = scmp.ne.s32.totalorder %s113, %s127
      %p129 = scmp.eq.s32.totalorder %s21, 0
      %p130 = por %p128, %p129
      %s131 = ssub.s32 %s22, %s34
      %p132 = scmp.eq.s32.totalorder %s131, 0
      %s134 = sadd.s32 %s133, 1
      %s135 = scalar_select %p132, %s133, %s134
      %p138 = pneg %p132
      %p139 = scmp.eq.s32.totalorder %s15, 1
      %p140 = por %p138, %p139
      %p141 = scmp.ne.s32.totalorder %s133, %s136
      %p142 = scmp.eq.s32.totalorder %s15, 0
      %p143 = por %p141, %p142
      %p144 = scmp.ne.s32.totalorder %s133, %s136
      %p145 = scmp.eq.s32.totalorder %s20, 1
      %p146 = por %p144, %p145
      %p147 = scmp.ne.s32.totalorder %s136, %s137
      %p148 = scmp.eq.s32.totalorder %s20, 0
      %p149 = por %p147, %p148
      %p150 = scmp.ne.s32.totalorder %s136, %s137
      %p151 = scmp.eq.s32.totalorder %s21, 1
      %p152 = por %p150, %p151
      %p154 = scmp.ne.s32.totalorder %s137, %s153
      %p155 = scmp.eq.s32.totalorder %s21, 0
      %p156 = por %p154, %p155
      %p157 = scmp.le.s32.totalorder 1, %s15
      %p158 = scmp.lt.s32.totalorder %s15, 3
      %p159 = pnand %p157, %p158
      %p160 = pneg %p159
      // Predicated region
      $region9: #{tpu_custom_call.1} parent=5 // pred_check
        _
      $region10: #{tpu_custom_call.1} parent=5 // pred_check_branch
        %162 = sbr.rel (%p159) target = $region12
      $region11: #{tpu_custom_call.1} parent=5 // pred_region
        %s163 = ssub.s32 %s15, 1
        // Predicated region
        $region13: #{tpu_custom_call.1} parent=11 // pred_check
          %p164 = pneg %p53
        $region14: #{tpu_custom_call.1} parent=11 // pred_check_branch
          %166 = sbr.rel (%p164) target = $region16
        $region15: #{tpu_custom_call.1} parent=11 // pred_region
          %s167 = smul.u32 16, %s25
          %s169 = ssub.s32 1024, 1024
          %170 = vsyncadd [#allocation3], %s169
          %s171 = smul.addr %s167, 64
          %s172 = scalar_lea.hbm %s0, %s171
          %s173 = sshll.u32 [#allocation2], 4
          %s174 = int_to_ptr.vmem [resolvable:$true] %s173
          %179 = dma.hbm_to_vmem [thread:$0]  %s172, 1024, %s174, [#allocation3], 64, 64, 4
        $region16: #{tpu_custom_call.1} parent=11 // pred_fallthru
          _
        // Predicated region
        $region17: #{tpu_custom_call.1} parent=11 // pred_check
          %p180 = pneg %p74
        $region18: #{tpu_custom_call.1} parent=11 // pred_check_branch
          %182 = sbr.rel (%p180) target = $region20
        $region19: #{tpu_custom_call.1} parent=11 // pred_region
          %s184 = ssub.s32 1024, 1024
          %185 = vsyncadd [#allocation6], %s184
          %s186 = sshll.u32 [#allocation5], 4
          %s187 = int_to_ptr.vmem [resolvable:$true] %s186
          %192 = dma.hbm_to_vmem [thread:$0]  %s1, 1024, %s187, [#allocation6], 64, 64, 4
        $region20: #{tpu_custom_call.1} parent=11 // pred_fallthru
          _
        // Predicated region
        $region21: #{tpu_custom_call.1} parent=11 // pred_check
          %p193 = pneg %p123
        $region22: #{tpu_custom_call.1} parent=11 // pred_check_branch
          %195 = sbr.rel (%p193) target = $region24
        $region23: #{tpu_custom_call.1} parent=11 // pred_region
          _
        $region24: #{tpu_custom_call.1} parent=11 // pred_fallthru
          _
      $region12: #{tpu_custom_call.1} parent=5 // pred_fallthru
        _
      %p196 = scmp.lt.s32.totalorder %s15, 2
      // Predicated region
      $region25: #{tpu_custom_call.1} parent=5 // pred_check
        %p197 = pneg %p196
      $region26: #{tpu_custom_call.1} parent=5 // pred_check_branch
        %199 = sbr.rel (%p197) target = $region28
      $region27: #{tpu_custom_call.1} parent=5 // pred_region
        // Predicated region
        $region29: #{tpu_custom_call.1} parent=27 // pred_check
          %p200 = pneg %p96
        $region30: #{tpu_custom_call.1} parent=27 // pred_check_branch
          %202 = sbr.rel (%p200) target = $region32
        $region31: #{tpu_custom_call.1} parent=27 // pred_region
          %s203 = sand.u32 %s15, 1
          %s204 = scalar_lea.sflag [#allocation3], %s203
          %s205 = sand.u32 %s86, 1
          %s206 = smul.addr %s205, 32
          %s207 = scalar_lea.vmem [#allocation7], %s206
          %s208 = smul.u32 8, %s22
          %s210 = ssub.s32 512, 512
          %211 = vsyncadd %s204, %s210
          %s212 = sadd.s32 %s23, %s208
          %s213 = smul.addr %s212, 64
          %s214 = scalar_lea.hbm %s2, %s213
          %s215 = sshll.u32 %s207, 4
          %s216 = int_to_ptr.vmem [resolvable:$true] %s215
          %221 = dma.hbm_to_vmem [thread:$0]  %s214, 512, %s216, %s204, 64, 64, 4
        $region32: #{tpu_custom_call.1} parent=27 // pred_fallthru
          _
      $region28: #{tpu_custom_call.1} parent=5 // pred_fallthru
        _
      %p222 = scmp.le.s32.totalorder 1, %s15
      %p223 = scmp.lt.s32.totalorder %s15, 3
      %p224 = pnand %p222, %p223
      %p225 = pneg %p224
      // Predicated region
      $region33: #{tpu_custom_call.1} parent=5 // pred_check
        _
      $region34: #{tpu_custom_call.1} parent=5 // pred_check_branch
        %227 = sbr.rel (%p224) target = $region36
      $region35: #{tpu_custom_call.1} parent=5 // pred_region
        %s228 = ssub.s32 %s15, 1
        // Predicated region
        $region37: #{tpu_custom_call.1} parent=35 // pred_check
          %p229 = pneg %p53
        $region38: #{tpu_custom_call.1} parent=35 // pred_check_branch
          %231 = sbr.rel (%p229) target = $region40
        $region39: #{tpu_custom_call.1} parent=35 // pred_region
          %232 = dma.done [#allocation3], 1024
        $region40: #{tpu_custom_call.1} parent=35 // pred_fallthru
          _
        // Predicated region
        $region41: #{tpu_custom_call.1} parent=35 // pred_check
          %p233 = pneg %p74
        $region42: #{tpu_custom_call.1} parent=35 // pred_check_branch
          %235 = sbr.rel (%p233) target = $region44
        $region43: #{tpu_custom_call.1} parent=35 // pred_region
          %236 = dma.done [#allocation6], 1024
        $region44: #{tpu_custom_call.1} parent=35 // pred_fallthru
          _
        %s237 = sand.u32 %s20, 1
        %s238 = scalar_lea.sflag [#allocation3], %s237
        %s239 = sand.u32 %s89, 1
        %s240 = smul.addr %s239, 32
        %s241 = scalar_lea.vmem [#allocation7], %s240
        // Predicated region
        $region45: #{tpu_custom_call.1} parent=35 // pred_check
          %p242 = pneg %p102
        $region46: #{tpu_custom_call.1} parent=35 // pred_check_branch
          %244 = sbr.rel (%p242) target = $region48
        $region47: #{tpu_custom_call.1} parent=35 // pred_region
          %245 = dma.done %s238, 512
        $region48: #{tpu_custom_call.1} parent=35 // pred_fallthru
          _
        %p246 = pneg %p53
        %p247 = pneg %p50
        %p248 = pneg %p74
        %p249 = pneg %p71
        %s250 = sand.u32 %s20, 1
        %s251 = scalar_lea.sflag [#allocation3], %s250
        %s252 = sand.u32 %s89, 1
        %s253 = smul.addr %s252, 32
        %s254 = scalar_lea.vmem [#allocation7], %s253
        %p255 = pneg %p102
        %p256 = pneg %p99
        %p257 = pneg %p123
        %p258 = pneg %p120
        %p259 = pneg %p149
        %p260 = pneg %p146
        %s261 = sand.u32 %s136, 1
        %s262 = scalar_lea.sflag [#allocation4], %s261
        %s263 = sand.u32 %s136, 1
        %s264 = smul.addr %s263, 64
        %s265 = scalar_lea.vmem [#allocation8], %s264
        %s266 = smul.u32 16, %s25
        %s267 = smul.u32 8, %s24
        %s268 = smul.u32 8, %s24
        %p270 = scmp.eq.s32.totalorder %s25, 0
        // Predicated region
        $region49: #{tpu_custom_call.1} parent=35 // pred_check
          %p271 = pneg %p270
        $region50: #{tpu_custom_call.1} parent=35 // pred_check_branch
          %273 = sbr.rel (%p271) target = $region52
        $region51: #{tpu_custom_call.1} parent=35 // pred_region
          %274 = vst [vmem:[%s265] sm:$0xff] 0.0
          %275 = vst [vmem:[%s265 + $0x8] sm:$0xff] 0.0
          %276 = vst [vmem:[%s265 + $0x10] sm:$0xff] 0.0
          %277 = vst [vmem:[%s265 + $0x18] sm:$0xff] 0.0
          %278 = vst [vmem:[%s265 + $0x20] sm:$0xff] 0.0
          %279 = vst [vmem:[%s265 + $0x28] sm:$0xff] 0.0
          %280 = vst [vmem:[%s265 + $0x30] sm:$0xff] 0.0
          %281 = vst [vmem:[%s265 + $0x38] sm:$0xff] 0.0
        $region52: #{tpu_custom_call.1} parent=35 // pred_fallthru
          _
        %v282 = vld [vmem:[#allocation2] sm:$0xf]
        %v283 = vld [vmem:[#allocation2 + $0x4] sm:$0xf]
        %v284 = vld [vmem:[#allocation2 + $0x8] sm:$0xf]
        %v285 = vld [vmem:[#allocation2 + $0xc] sm:$0xf]
        %v286 = vld [vmem:[#allocation2 + $0x10] sm:$0xf]
        %v287 = vld [vmem:[#allocation2 + $0x14] sm:$0xf]
        %v288 = vld [vmem:[#allocation2 + $0x18] sm:$0xf]
        %v289 = vld [vmem:[#allocation2 + $0x1c] sm:$0xf]
        %v290 = vld [vmem:[#allocation2 + $0x20] sm:$0xf]
        %v291 = vld [vmem:[#allocation2 + $0x24] sm:$0xf]
        %v292 = vld [vmem:[#allocation2 + $0x28] sm:$0xf]
        %v293 = vld [vmem:[#allocation2 + $0x2c] sm:$0xf]
        %v294 = vld [vmem:[#allocation2 + $0x30] sm:$0xf]
        %v295 = vld [vmem:[#allocation2 + $0x34] sm:$0xf]
        %v296 = vld [vmem:[#allocation2 + $0x38] sm:$0xf]
        %v297 = vld [vmem:[#allocation2 + $0x3c] sm:$0xf]
        %v298 = vld [vmem:[#allocation5] sm:$0xf]
        %v299 = vld [vmem:[#allocation5 + $0x4] sm:$0xf]
        %v300 = vld [vmem:[#allocation5 + $0x8] sm:$0xf]
        %v301 = vld [vmem:[#allocation5 + $0xc] sm:$0xf]
        %v302 = vld [vmem:[#allocation5 + $0x10] sm:$0xf]
        %v303 = vld [vmem:[#allocation5 + $0x14] sm:$0xf]
        %v304 = vld [vmem:[#allocation5 + $0x18] sm:$0xf]
        %v305 = vld [vmem:[#allocation5 + $0x1c] sm:$0xf]
        %v306 = vld [vmem:[#allocation5 + $0x20] sm:$0xf]
        %v307 = vld [vmem:[#allocation5 + $0x24] sm:$0xf]
        %v308 = vld [vmem:[#allocation5 + $0x28] sm:$0xf]
        %v309 = vld [vmem:[#allocation5 + $0x2c] sm:$0xf]
        %v310 = vld [vmem:[#allocation5 + $0x30] sm:$0xf]
        %v311 = vld [vmem:[#allocation5 + $0x34] sm:$0xf]
        %v312 = vld [vmem:[#allocation5 + $0x38] sm:$0xf]
        %v313 = vld [vmem:[#allocation5 + $0x3c] sm:$0xf]
        %v330 = vunpack.c.l.b16 %v282
        %v331 = vunpack.c.l.b16 %v283
        %v332 = vunpack.c.l.b16 %v284
        %v333 = vunpack.c.l.b16 %v285
        %v334 = vunpack.c.l.b16 %v286
        %v335 = vunpack.c.l.b16 %v287
        %v336 = vunpack.c.l.b16 %v288
        %v337 = vunpack.c.l.b16 %v289
        %v338 = vunpack.c.l.b16 %v290
        %v339 = vunpack.c.l.b16 %v291
        %v340 = vunpack.c.l.b16 %v292
        %v341 = vunpack.c.l.b16 %v293
        %v342 = vunpack.c.l.b16 %v294
        %v343 = vunpack.c.l.b16 %v295
        %v344 = vunpack.c.l.b16 %v296
        %v345 = vunpack.c.l.b16 %v297
        %v346 = vpack.c.b16 %v331, %v330
        %v347 = vpack.c.b16 %v333, %v332
        %v348 = vpack.c.b16 %v335, %v334
        %v349 = vpack.c.b16 %v337, %v336
        %v350 = vpack.c.b16 %v339, %v338
        %v351 = vpack.c.b16 %v341, %v340
        %v352 = vpack.c.b16 %v343, %v342
        %v353 = vpack.c.b16 %v345, %v344
        %v378 = vunpack.c.l.b16 %v298
        %v379 = vunpack.c.l.b16 %v299
        %v380 = vunpack.c.l.b16 %v300
        %v381 = vunpack.c.l.b16 %v301
        %v382 = vunpack.c.l.b16 %v302
        %v383 = vunpack.c.l.b16 %v303
        %v384 = vunpack.c.l.b16 %v304
        %v385 = vunpack.c.l.b16 %v305
        %v386 = vunpack.c.l.b16 %v306
        %v387 = vunpack.c.l.b16 %v307
        %v388 = vunpack.c.l.b16 %v308
        %v389 = vunpack.c.l.b16 %v309
        %v390 = vunpack.c.l.b16 %v310
        %v391 = vunpack.c.l.b16 %v311
        %v392 = vunpack.c.l.b16 %v312
        %v393 = vunpack.c.l.b16 %v313
        %v394 = vpack.c.b16 %v379, %v378
        %v395 = vpack.c.b16 %v381, %v380
        %v396 = vpack.c.b16 %v383, %v382
        %v397 = vpack.c.b16 %v385, %v384
        %v398 = vpack.c.b16 %v387, %v386
        %v399 = vpack.c.b16 %v389, %v388
        %v400 = vpack.c.b16 %v391, %v390
        %v401 = vpack.c.b16 %v393, %v392
        %410 = vmatprep.subr.bf16.mxu0 0
        %411 = vmatpush1.bf16.msra.mxu0 %v401
        %412 = vmatprep.subr.bf16.mxu0 0
        %413 = vmatpush1.bf16.msra.mxu0 %v400
        %414 = vmatprep.subr.bf16.mxu0 0
        %415 = vmatpush1.bf16.msra.mxu0 %v399
        %416 = vmatprep.subr.bf16.mxu0 0
        %417 = vmatpush1.bf16.msra.mxu0 %v398
        %418 = vmatprep.subr.bf16.mxu0 0
        %419 = vmatpush1.bf16.msra.mxu0 %v397
        %420 = vmatprep.subr.bf16.mxu0 0
        %421 = vmatpush1.bf16.msra.mxu0 %v396
        %422 = vmatprep.subr.bf16.mxu0 0
        %423 = vmatpush1.bf16.msra.mxu0 %v395
        %424 = vmatprep.subr.bf16.mxu0 0
        %425 = vmatpush1.bf16.msra.mxu0 %v394
        %426 = vmatprep.subr.bf16.mxu0 0
        %427 = vmatpush2.bf16.msra.mxu0 0
        %428 = vmatprep.subr.bf16.mxu0 0
        %429 = vmatpush2.bf16.msra.mxu0 0
        %430 = vmatprep.subr.bf16.mxu0 0
        %431 = vmatpush2.bf16.msra.mxu0 0
        %432 = vmatprep.subr.bf16.mxu0 0
        %433 = vmatpush2.bf16.msra.mxu0 0
        %434 = vmatprep.subr.bf16.mxu0 0
        %435 = vmatpush2.bf16.msra.mxu0 0
        %436 = vmatprep.subr.bf16.mxu0 0
        %437 = vmatpush2.bf16.msra.mxu0 0
        %438 = vmatprep.subr.bf16.mxu0 0
        %439 = vmatpush2.bf16.msra.mxu0 0
        %440 = vmatprep.subr.bf16.mxu0 0
        %441 = vmatpush2.bf16.msra.mxu0 0
        %442 = vmatprep.mubr.bf16.mxu0 0
        %443 = vmatmul.mubr.bf16.gmra.mxu0 %v346
        %v444 = vpop.f32.mrf.mxu0
        %v445 = vadd.f32 0.0, %v444
        %v446 = vpop.f32.mrf.mxu0
        %v447 = vpop.f32.mrf.mxu0
        %v448 = vadd.f32 0.0, %v447
        %v449 = vpop.f32.mrf.mxu0
        %450 = vmatprep.mubr.bf16.mxu0 0
        %451 = vmatmul.mubr.bf16.gmra.mxu0 %v347
        %v452 = vpop.f32.mrf.mxu0
        %v453 = vadd.f32 0.0, %v452
        %v454 = vpop.f32.mrf.mxu0
        %v455 = vpop.f32.mrf.mxu0
        %v456 = vadd.f32 0.0, %v455
        %v457 = vpop.f32.mrf.mxu0
        %458 = vmatprep.mubr.bf16.mxu0 0
        %459 = vmatmul.mubr.bf16.gmra.mxu0 %v348
        %v460 = vpop.f32.mrf.mxu0
        %v461 = vadd.f32 0.0, %v460
        %v462 = vpop.f32.mrf.mxu0
        %v463 = vpop.f32.mrf.mxu0
        %v464 = vadd.f32 0.0, %v463
        %v465 = vpop.f32.mrf.mxu0
        %466 = vmatprep.mubr.bf16.mxu0 0
        %467 = vmatmul.mubr.bf16.gmra.mxu0 %v349
        %v468 = vpop.f32.mrf.mxu0
        %v469 = vadd.f32 0.0, %v468
        %v470 = vpop.f32.mrf.mxu0
        %v471 = vpop.f32.mrf.mxu0
        %v472 = vadd.f32 0.0, %v471
        %v473 = vpop.f32.mrf.mxu0
        %474 = vmatprep.mubr.bf16.mxu0 0
        %475 = vmatmul.mubr.bf16.gmra.mxu0 %v350
        %v476 = vpop.f32.mrf.mxu0
        %v477 = vadd.f32 0.0, %v476
        %v478 = vpop.f32.mrf.mxu0
        %v479 = vpop.f32.mrf.mxu0
        %v480 = vadd.f32 0.0, %v479
        %v481 = vpop.f32.mrf.mxu0
        %482 = vmatprep.mubr.bf16.mxu0 0
        %483 = vmatmul.mubr.bf16.gmra.mxu0 %v351
        %v484 = vpop.f32.mrf.mxu0
        %v485 = vadd.f32 0.0, %v484
        %v486 = vpop.f32.mrf.mxu0
        %v487 = vpop.f32.mrf.mxu0
        %v488 = vadd.f32 0.0, %v487
        %v489 = vpop.f32.mrf.mxu0
        %490 = vmatprep.mubr.bf16.mxu0 0
        %491 = vmatmul.mubr.bf16.gmra.mxu0 %v352
        %v492 = vpop.f32.mrf.mxu0
        %v493 = vadd.f32 0.0, %v492
        %v494 = vpop.f32.mrf.mxu0
        %v495 = vpop.f32.mrf.mxu0
        %v496 = vadd.f32 0.0, %v495
        %v497 = vpop.f32.mrf.mxu0
        %498 = vmatprep.mubr.bf16.mxu0 0
        %499 = vmatmul.mubr.bf16.gmra.mxu0 %v353
        %v500 = vpop.f32.mrf.mxu0
        %v501 = vadd.f32 0.0, %v500
        %v502 = vpop.f32.mrf.mxu0
        %v503 = vpop.f32.mrf.mxu0
        %v504 = vadd.f32 0.0, %v503
        %v505 = vpop.f32.mrf.mxu0
        %506 = vdwg.mxu0
        %v507 = vld [vmem:[%s265] sm:$0xff]
        %v508 = vld [vmem:[%s265 + $0x8] sm:$0xff]
        %v509 = vld [vmem:[%s265 + $0x10] sm:$0xff]
        %v510 = vld [vmem:[%s265 + $0x18] sm:$0xff]
        %v511 = vld [vmem:[%s265 + $0x20] sm:$0xff]
        %v512 = vld [vmem:[%s265 + $0x28] sm:$0xff]
        %v513 = vld [vmem:[%s265 + $0x30] sm:$0xff]
        %v514 = vld [vmem:[%s265 + $0x38] sm:$0xff]
        %v515 = vld [vmem:[%s241] sm:$0xf]
        %v516 = vld [vmem:[%s241 + $0x4] sm:$0xf]
        %v517 = vld [vmem:[%s241 + $0x8] sm:$0xf]
        %v518 = vld [vmem:[%s241 + $0xc] sm:$0xf]
        %v519 = vld [vmem:[%s241 + $0x10] sm:$0xf]
        %v520 = vld [vmem:[%s241 + $0x14] sm:$0xf]
        %v521 = vld [vmem:[%s241 + $0x18] sm:$0xf]
        %v522 = vld [vmem:[%s241 + $0x1c] sm:$0xf]
        %v523 = vpack.c.bf16 %v448, %v445
        %v524 = vpack.c.bf16 %v456, %v453
        %v525 = vpack.c.bf16 %v464, %v461
        %v526 = vpack.c.bf16 %v472, %v469
        %v527 = vpack.c.bf16 %v480, %v477
        %v528 = vpack.c.bf16 %v488, %v485
        %v529 = vpack.c.bf16 %v496, %v493
        %v530 = vpack.c.bf16 %v504, %v501
        %v539 = vunpack.c.l.b16 %v515
        %v540 = vunpack.c.l.b16 %v516
        %v541 = vunpack.c.l.b16 %v517
        %v542 = vunpack.c.l.b16 %v518
        %v543 = vunpack.c.l.b16 %v519
        %v544 = vunpack.c.l.b16 %v520
        %v545 = vunpack.c.l.b16 %v521
        %v546 = vunpack.c.l.b16 %v522
        %v547 = vpack.c.b16 %v540, %v539
        %v548 = vpack.c.b16 %v542, %v541
        %v549 = vpack.c.b16 %v544, %v543
        %v550 = vpack.c.b16 %v546, %v545
        %555 = vmatprep.subr.bf16.mxu0 0
        %556 = vmatpush1.bf16.msra.mxu0 %v530
        %557 = vmatprep.subr.bf16.mxu0 0
        %558 = vmatpush1.bf16.msra.mxu0 %v529
        %559 = vmatprep.subr.bf16.mxu0 0
        %560 = vmatpush1.bf16.msra.mxu0 %v528
        %561 = vmatprep.subr.bf16.mxu0 0
        %562 = vmatpush1.bf16.msra.mxu0 %v527
        %563 = vmatprep.subr.bf16.mxu0 0
        %564 = vmatpush1.bf16.msra.mxu0 %v526
        %565 = vmatprep.subr.bf16.mxu0 0
        %566 = vmatpush1.bf16.msra.mxu0 %v525
        %567 = vmatprep.subr.bf16.mxu0 0
        %568 = vmatpush1.bf16.msra.mxu0 %v524
        %569 = vmatprep.subr.bf16.mxu0 0
        %570 = vmatpush1.bf16.msra.mxu0 %v523
        %571 = vmatprep.subr.bf16.mxu0 0
        %572 = vmatpush2.bf16.msra.mxu0 0
        %573 = vmatprep.subr.bf16.mxu0 0
        %574 = vmatpush2.bf16.msra.mxu0 0
        %575 = vmatprep.subr.bf16.mxu0 0
        %576 = vmatpush2.bf16.msra.mxu0 0
        %577 = vmatprep.subr.bf16.mxu0 0
        %578 = vmatpush2.bf16.msra.mxu0 0
        %579 = vmatprep.subr.bf16.mxu0 0
        %580 = vmatpush2.bf16.msra.mxu0 0
        %581 = vmatprep.subr.bf16.mxu0 0
        %582 = vmatpush2.bf16.msra.mxu0 0
        %583 = vmatprep.subr.bf16.mxu0 0
        %584 = vmatpush2.bf16.msra.mxu0 0
        %585 = vmatprep.subr.bf16.mxu0 0
        %586 = vmatpush2.bf16.msra.mxu0 0
        %587 = vmatprep.mubr.bf16.mxu0 0
        %588 = vmatmul.mubr.bf16.gmra.mxu0 %v547
        %v589 = vpop.f32.mrf.mxu0
        %v590 = vadd.f32 0.0, %v589
        %v591 = vpop.f32.mrf.mxu0
        %v592 = vpop.f32.mrf.mxu0
        %v593 = vadd.f32 0.0, %v592
        %v594 = vpop.f32.mrf.mxu0
        %595 = vmatprep.mubr.bf16.mxu0 0
        %596 = vmatmul.mubr.bf16.gmra.mxu0 %v548
        %v597 = vpop.f32.mrf.mxu0
        %v598 = vadd.f32 0.0, %v597
        %v599 = vpop.f32.mrf.mxu0
        %v600 = vpop.f32.mrf.mxu0
        %v601 = vadd.f32 0.0, %v600
        %v602 = vpop.f32.mrf.mxu0
        %603 = vmatprep.mubr.bf16.mxu0 0
        %604 = vmatmul.mubr.bf16.gmra.mxu0 %v549
        %v605 = vpop.f32.mrf.mxu0
        %v606 = vadd.f32 0.0, %v605
        %v607 = vpop.f32.mrf.mxu0
        %v608 = vpop.f32.mrf.mxu0
        %v609 = vadd.f32 0.0, %v608
        %v610 = vpop.f32.mrf.mxu0
        %611 = vmatprep.mubr.bf16.mxu0 0
        %612 = vmatmul.mubr.bf16.gmra.mxu0 %v550
        %v613 = vpop.f32.mrf.mxu0
        %v614 = vadd.f32 0.0, %v613
        %v615 = vpop.f32.mrf.mxu0
        %v616 = vpop.f32.mrf.mxu0
        %v617 = vadd.f32 0.0, %v616
        %v618 = vpop.f32.mrf.mxu0
        %619 = vdwg.mxu0
        %v620 = vadd.f32 %v507, %v590
        %v621 = vadd.f32 %v508, %v593
        %v622 = vadd.f32 %v509, %v598
        %v623 = vadd.f32 %v510, %v601
        %v624 = vadd.f32 %v511, %v606
        %v625 = vadd.f32 %v512, %v609
        %v626 = vadd.f32 %v513, %v614
        %v627 = vadd.f32 %v514, %v617
        %628 = vst [vmem:[%s265] sm:$0xff] %v620
        %629 = vst [vmem:[%s265 + $0x8] sm:$0xff] %v621
        %630 = vst [vmem:[%s265 + $0x10] sm:$0xff] %v622
        %631 = vst [vmem:[%s265 + $0x18] sm:$0xff] %v623
        %632 = vst [vmem:[%s265 + $0x20] sm:$0xff] %v624
        %633 = vst [vmem:[%s265 + $0x28] sm:$0xff] %v625
        %634 = vst [vmem:[%s265 + $0x30] sm:$0xff] %v626
        %635 = vst [vmem:[%s265 + $0x38] sm:$0xff] %v627
        // Predicated region
        $region53: #{tpu_custom_call.1} parent=35 // pred_check
          %p636 = pneg %p270
        $region54: #{tpu_custom_call.1} parent=35 // pred_check_branch
          %638 = sbr.rel (%p636) target = $region56
        $region55: #{tpu_custom_call.1} parent=35 // pred_region
          %v639 = vld [vmem:[%s265] sm:$0xff]
          %v640 = vld [vmem:[%s265 + $0x8] sm:$0xff]
          %v641 = vld [vmem:[%s265 + $0x10] sm:$0xff]
          %v642 = vld [vmem:[%s265 + $0x18] sm:$0xff]
          %v643 = vld [vmem:[%s265 + $0x20] sm:$0xff]
          %v644 = vld [vmem:[%s265 + $0x28] sm:$0xff]
          %v645 = vld [vmem:[%s265 + $0x30] sm:$0xff]
          %v646 = vld [vmem:[%s265 + $0x38] sm:$0xff]
          %v647 = vld [vmem:[%s3] sm:$0x1]
          %v649 = vlaneseq
          %v650 = vshrl.u32 %v649, 7
          %v651 = vsub.s32 0, %v650
          %v652 = vrot.slane %v647, %v651
          %v654 = vadd.f32 %v639, %v652
          %v655 = vadd.f32 %v640, %v652
          %v656 = vadd.f32 %v641, %v652
          %v657 = vadd.f32 %v642, %v652
          %v658 = vadd.f32 %v643, %v652
          %v659 = vadd.f32 %v644, %v652
          %v660 = vadd.f32 %v645, %v652
          %v661 = vadd.f32 %v646, %v652
          %662 = vst [vmem:[%s265] sm:$0xff] %v654
          %663 = vst [vmem:[%s265 + $0x8] sm:$0xff] %v655
          %664 = vst [vmem:[%s265 + $0x10] sm:$0xff] %v656
          %665 = vst [vmem:[%s265 + $0x18] sm:$0xff] %v657
          %666 = vst [vmem:[%s265 + $0x20] sm:$0xff] %v658
          %667 = vst [vmem:[%s265 + $0x28] sm:$0xff] %v659
          %668 = vst [vmem:[%s265 + $0x30] sm:$0xff] %v660
          %669 = vst [vmem:[%s265 + $0x38] sm:$0xff] %v661
        $region56: #{tpu_custom_call.1} parent=35 // pred_fallthru
          _
        %s670 = sand.u32 %s136, 1
        %s671 = scalar_lea.sflag [#allocation4], %s670
        %s672 = sand.u32 %s136, 1
        %s673 = smul.addr %s672, 64
        %s674 = scalar_lea.vmem [#allocation8], %s673
        // Predicated region
        $region57: #{tpu_custom_call.1} parent=35 // pred_check
          %p675 = pneg %p146
        $region58: #{tpu_custom_call.1} parent=35 // pred_check_branch
          %677 = sbr.rel (%p675) target = $region60
        $region59: #{tpu_custom_call.1} parent=35 // pred_region
          %s678 = smul.u32 8, %s24
          %s680 = ssub.s32 1024, 1024
          %681 = vsyncadd %s671, %s680
          %s682 = smul.addr %s678, 128
          %s683 = scalar_lea.hbm %s4, %s682
          %s684 = sshll.u32 %s674, 4
          %s685 = int_to_ptr.vmem [resolvable:$true] %s684
          %690 = dma.vmem_to_hbm [thread:$0]  %s685, 1024, %s683, %s671, 128, 128, 8
        $region60: #{tpu_custom_call.1} parent=35 // pred_fallthru
          _
      $region36: #{tpu_custom_call.1} parent=5 // pred_fallthru
        _
      %p691 = scmp.le.s32.totalorder 2, %s15
      // Predicated region
      $region61: #{tpu_custom_call.1} parent=5 // pred_check
        %p692 = pneg %p691
      $region62: #{tpu_custom_call.1} parent=5 // pred_check_branch
        %694 = sbr.rel (%p692) target = $region64
      $region63: #{tpu_custom_call.1} parent=5 // pred_region
        %s695 = ssub.s32 %s15, 2
        // Predicated region
        $region65: #{tpu_custom_call.1} parent=63 // pred_check
          %p696 = pneg %p152
        $region66: #{tpu_custom_call.1} parent=63 // pred_check_branch
          %698 = sbr.rel (%p696) target = $region68
        $region67: #{tpu_custom_call.1} parent=63 // pred_region
          %s699 = sand.u32 %s137, 1
          %s700 = scalar_lea.sflag [#allocation4], %s699
          %s701 = sand.u32 %s137, 1
          %s702 = smul.addr %s701, 64
          %s703 = scalar_lea.vmem [#allocation8], %s702
          %704 = dma.done %s700, 1024
        $region68: #{tpu_custom_call.1} parent=63 // pred_fallthru
          _
      $region64: #{tpu_custom_call.1} parent=5 // pred_fallthru
        _
    $region6: #{tpu_custom_call.1} parent=1 // loop_footer
      %s19 = sadd.s32 1, %s15
    $region7: #{tpu_custom_call.1} parent=1 // loop_footer_branch
      %14 = sbr.rel target = $region3
    $region8: #{tpu_custom_call.1} parent=1 // loop_exit
      _
    %705 = vsyncpa [#allocation3], 1
    %s706 = scalar_lea.sflag [#allocation3], 1
    %707 = vsyncpa %s706, 1
    %708 = vsyncpa [#allocation6], 1
    %709 = vsyncpa [#allocation4], 1
    %s710 = scalar_lea.sflag [#allocation4], 1
    %711 = vsyncpa %s710, 1

</llo_original>
